<compile_context>
chip_gen: v7x
topology: tpu7x:2x2x1
jax: 0.10.0
libtpu: 0.0.40
codegen_flags: <defaults>
</compile_context>

<pallas_src>
import jax
import jax.numpy as jnp
from jax.experimental import pallas as pl
from jax.experimental.pallas import tpu as pltpu


def _round_up(n, m):
    return (n + m - 1) // m * m


def predictor_kernel(x_ref, mask_ref, w1_ref, b1_ref, g1_ref, be1_ref,
                     w2_ref, b2_ref, fcw_ref, fcb_ref, out_ref):
    K = w1_ref.shape[0]          # conv kernel size
    F = w1_ref.shape[1]          # filter size (channels, on sublanes)
    M = x_ref.shape[1]           # lane tile width (whole padded sequences)
    pad = (K - 1) // 2
    eps = 1e-5                   # PyTorch LayerNorm default
    inv_f = 1.0 / F

    x = x_ref[...]               # (C_in, M), zero at per-sequence pad columns
    mask = mask_ref[...]         # (1, M), 1.0 at valid time positions

    def shifted(a, k):
        # column j of result = a[:, j + k - pad]; circular wraparound only
        # touches pad/tail columns, never read back as valid outputs.
        s = (pad - k) % M
        return a if s == 0 else pltpu.roll(a, shift=s, axis=1)

    # ---- conv1: K shallow accumulating MXU matmuls (no im2col concat) ----
    h = jnp.dot(w1_ref[0], shifted(x, 0), preferred_element_type=jnp.float32)
    for k in range(1, K):
        h = h + jnp.dot(w1_ref[k], shifted(x, k),
                        preferred_element_type=jnp.float32)
    h = jnp.maximum(h + b1_ref[...], 0.0)

    # ---- LayerNorm 1 over channels (sublane axis), two-pass variance ----
    mu = jnp.sum(h, axis=0, keepdims=True) * inv_f
    d = h - mu
    var = jnp.sum(d * d, axis=0, keepdims=True) * inv_f
    # dropout1: identity in eval mode.  Mask re-zeroes per-sequence conv
    # padding columns so conv2 sees torch-style zero padding.
    h = (d * jax.lax.rsqrt(var + eps) * g1_ref[...] + be1_ref[...]) * mask

    # ---- conv2: K shallow accumulating MXU matmuls ----
    h2 = jnp.dot(w2_ref[0], shifted(h, 0), preferred_element_type=jnp.float32)
    for k in range(1, K):
        h2 = h2 + jnp.dot(w2_ref[k], shifted(h, k),
                          preferred_element_type=jnp.float32)
    h2 = jnp.maximum(h2 + b2_ref[...], 0.0)

    # ---- LayerNorm 2 (normalization only; affine folded into fc weights) ----
    mu2 = jnp.sum(h2, axis=0, keepdims=True) * inv_f
    d2 = h2 - mu2
    var2 = jnp.sum(d2 * d2, axis=0, keepdims=True) * inv_f
    h2n = d2 * jax.lax.rsqrt(var2 + eps)
    # dropout2: identity in eval mode

    # ---- folded (LN2 affine + Linear F->1): VPU mul + sublane reduce ----
    # lane-dense (1, M) output row, no narrow masked stores.
    out_ref[...] = jnp.sum(h2n * fcw_ref[...], axis=0, keepdims=True) + fcb_ref[...]


def predictor_forward(x, params, kernel_size, *, target_tile_m=4096):
    """x: (B, T, E) float32 -> (B, T, 1) float32."""
    B, T, C_in = x.shape
    F = params["conv1_w"].shape[0]
    K = kernel_size
    pad = (K - 1) // 2
    T_pad = T + 2 * pad

    # Each padded sequence occupies a whole number of 128-lane groups, so
    # lane tiles that are a multiple of seq_stride are both (8,128)-legal and
    # sequence-aligned (rolls never cross sequences / tile boundaries).
    seq_stride = _round_up(T_pad, 128)
    seqs_per_tile = max(1, min(target_tile_m // seq_stride, B))
    tile_m = seqs_per_tile * seq_stride
    B_pad = _round_up(B, seqs_per_tile)
    num_tiles = B_pad // seqs_per_tile
    M_pad = B_pad * seq_stride

    # ---- pack activations: one transpose + one merged pad ----
    # (B,T,E) -> (E,B,T) -> pad batch tail + per-sequence conv/stride padding
    # in a single jnp.pad -> (E, M_pad)
    x_ebt = jnp.transpose(x.astype(jnp.float32), (2, 0, 1))
    x_cm = jnp.pad(
        x_ebt, ((0, 0), (0, B_pad - B), (pad, seq_stride - pad - T))
    ).reshape(C_in, M_pad)

    # Valid-column mask; pattern is periodic per sequence, so one tile-wide
    # mask is broadcast to every grid step.
    local = jnp.arange(tile_m) % seq_stride
    mask = ((local >= pad) & (local < pad + T)).astype(jnp.float32)[None, :]

    # ---- pack weights ----
    # torch conv weight is (C_out, C_in, K) -> (K, C_out, C_in): w[k] is one tap.
    w1 = jnp.transpose(params["conv1_w"], (2, 0, 1))          # (K, F, C_in)
    w2 = jnp.transpose(params["conv2_w"], (2, 0, 1))          # (K, F, F)
    b1 = params["conv1_b"].reshape(F, 1)
    g1 = params["ln1_g"].reshape(F, 1)
    be1 = params["ln1_b"].reshape(F, 1)
    b2 = params["conv2_b"].reshape(F, 1)
    # Fold LN2 affine into the final Linear (host-side precompute):
    #   out = sum_f (fc_w*g2)_f * norm_f + (sum_f fc_w_f*be2_f + fc_b)
    fc_w = params["fc_w"].reshape(F)
    fcw = (fc_w * params["ln2_g"]).reshape(F, 1)
    fcb = (jnp.sum(fc_w * params["ln2_b"]) + params["fc_b"].reshape(())
           ).reshape(1, 1)

    args = (x_cm, mask, w1, b1, g1, be1, w2, b2, fcw, fcb)

    def bcast_spec(a):
        nd = a.ndim
        return pl.BlockSpec(a.shape, lambda i, _nd=nd: (0,) * _nd)

    in_specs = [
        pl.BlockSpec((C_in, tile_m), lambda i: (0, i)),   # x: streamed lane tiles
        bcast_spec(mask),
        bcast_spec(w1), bcast_spec(b1), bcast_spec(g1), bcast_spec(be1),
        bcast_spec(w2), bcast_spec(b2), bcast_spec(fcw), bcast_spec(fcb),
    ]

    out = pl.pallas_call(
        predictor_kernel,
        out_shape=jax.ShapeDtypeStruct((1, M_pad), jnp.float32),
        grid_spec=pltpu.PrefetchScalarGridSpec(
            num_scalar_prefetch=0,
            grid=(num_tiles,),
            in_specs=in_specs,
            out_specs=pl.BlockSpec((1, tile_m), lambda i: (0, i)),
        ),
        compiler_params=pltpu.CompilerParams(
            dimension_semantics=("parallel",),        # megacore-shard on v7x
            vmem_limit_bytes=32 * 1024 * 1024,        # safe on v5e/v6e/v7x
        ),
    )(*args)

    # unpack: (1, M_pad) -> (B, T, 1), dropping pad / tail columns
    out = out[0].reshape(B_pad, seq_stride)[:B, pad:pad + T]
    return out[..., None]


def predictor_reference(x, params, kernel_size):
    """Pure-JAX reference mirroring the PyTorch forward (eval mode)."""
    pad = (kernel_size - 1) // 2
    eps = 1e-5

    def conv1d(z, w, b):  # z:(B,T,Cin)  w:(Cout,Cin,K)  b:(Cout,)
        zp = jnp.pad(z, ((0, 0), (pad, pad), (0, 0)))
        T = z.shape[1]
        out = sum(jnp.einsum("btc,fc->btf", zp[:, k:k + T, :], w[:, :, k])
                  for k in range(kernel_size))
        return out + b[None, None, :]

    def layernorm(z, g, b):
        mu = jnp.mean(z, axis=-1, keepdims=True)
        var = jnp.mean((z - mu) ** 2, axis=-1, keepdims=True)
        return (z - mu) * jax.lax.rsqrt(var + eps) * g + b

    h = jax.nn.relu(conv1d(x, params["conv1_w"], params["conv1_b"]))
    h = layernorm(h, params["ln1_g"], params["ln1_b"])
    h = jax.nn.relu(conv1d(h, params["conv2_w"], params["conv2_b"]))
    h = layernorm(h, params["ln2_g"], params["ln2_b"])
    return (jnp.einsum("btf,of->bto", h, params["fc_w"])
            + params["fc_b"][None, None, :])


if __name__ == "__main__":
    # model_config: encoder_dim=32, pitch_predictor_filter_size=32, kernel=3
    B, T, E, F, K = 2, 16, 32, 32, 3

    key = jax.random.PRNGKey(0)
    ks = jax.random.split(key, 12)
    params = {
        # torch-layout parameters
        "conv1_w": 0.1 * jax.random.normal(ks[0], (F, E, K), jnp.float32),
        "conv1_b": 0.1 * jax.random.normal(ks[1], (F,), jnp.float32),
        "ln1_g": 1.0 + 0.1 * jax.random.normal(ks[2], (F,), jnp.float32),
        "ln1_b": 0.1 * jax.random.normal(ks[3], (F,), jnp.float32),
        "conv2_w": 0.1 * jax.random.normal(ks[4], (F, F, K), jnp.float32),
        "conv2_b": 0.1 * jax.random.normal(ks[5], (F,), jnp.float32),
        "ln2_g": 1.0 + 0.1 * jax.random.normal(ks[6], (F,), jnp.float32),
        "ln2_b": 0.1 * jax.random.normal(ks[7], (F,), jnp.float32),
        "fc_w": 0.1 * jax.random.normal(ks[8], (1, F), jnp.float32),
        "fc_b": 0.1 * jax.random.normal(ks[9], (1,), jnp.float32),
    }
    x = jax.random.normal(ks[10], (B, T, E), jnp.float32)

    out = predictor_forward(x, params, K)
    out = jax.block_until_ready(out)

    ref = predictor_reference(x, params, K)
    assert out.shape == (B, T, 1), out.shape
    assert jnp.allclose(out, ref, rtol=1e-4, atol=1e-4), \
        f"max abs err {jnp.max(jnp.abs(out - ref))}"

    print("KERNEL_OK")
</pallas_src>

<mosaic_0001>
module attributes {stable_mosaic.version = 11 : i64} {
  func.func @predictor_kernel(%arg0: i32, %arg1: memref<32x256xf32, #tpu.memory_space<vmem>>, %arg2: memref<1x256xf32, #tpu.memory_space<vmem>>, %arg3: memref<3x32x32xf32, #tpu.memory_space<vmem>>, %arg4: memref<32x1xf32, #tpu.memory_space<vmem>>, %arg5: memref<32x1xf32, #tpu.memory_space<vmem>>, %arg6: memref<32x1xf32, #tpu.memory_space<vmem>>, %arg7: memref<3x32x32xf32, #tpu.memory_space<vmem>>, %arg8: memref<32x1xf32, #tpu.memory_space<vmem>>, %arg9: memref<32x1xf32, #tpu.memory_space<vmem>>, %arg10: memref<1x1xf32, #tpu.memory_space<vmem>>, %arg11: memref<1x256xf32, #tpu.memory_space<vmem>>) attributes {dimension_semantics = [#tpu.dimension_semantics<parallel>], iteration_bounds = array<i64: 1>, scalar_prefetch = 0 : i64, scratch_operands = 0 : i64, tpu.core_type = #tpu.core_type<tc>, window_params = [{transform_indices = @transform_0, window_bounds = array<i64: 32, 256>}, {pipeline_mode = #tpu.pipeline_mode<synchronous>, transform_indices = @transform_1, window_bounds = array<i64: 1, 256>}, {pipeline_mode = #tpu.pipeline_mode<synchronous>, transform_indices = @transform_2, window_bounds = array<i64: 3, 32, 32>}, {pipeline_mode = #tpu.pipeline_mode<synchronous>, transform_indices = @transform_3, window_bounds = array<i64: 32, 1>}, {pipeline_mode = #tpu.pipeline_mode<synchronous>, transform_indices = @transform_4, window_bounds = array<i64: 32, 1>}, {pipeline_mode = #tpu.pipeline_mode<synchronous>, transform_indices = @transform_5, window_bounds = array<i64: 32, 1>}, {pipeline_mode = #tpu.pipeline_mode<synchronous>, transform_indices = @transform_6, window_bounds = array<i64: 3, 32, 32>}, {pipeline_mode = #tpu.pipeline_mode<synchronous>, transform_indices = @transform_7, window_bounds = array<i64: 32, 1>}, {pipeline_mode = #tpu.pipeline_mode<synchronous>, transform_indices = @transform_8, window_bounds = array<i64: 32, 1>}, {pipeline_mode = #tpu.pipeline_mode<synchronous>, transform_indices = @transform_9, window_bounds = array<i64: 1, 1>}, {transform_indices = @transform_10, window_bounds = array<i64: 1, 256>}]} {
    %c0 = arith.constant 0 : index
    %c0_0 = arith.constant 0 : index
    %0 = vector.load %arg1[%c0, %c0_0] : memref<32x256xf32, #tpu.memory_space<vmem>>, vector<32x256xf32>
    %c0_1 = arith.constant 0 : index
    %c0_2 = arith.constant 0 : index
    %1 = vector.load %arg2[%c0_1, %c0_2] : memref<1x256xf32, #tpu.memory_space<vmem>>, vector<1x256xf32>
    %c0_3 = arith.constant 0 : index
    %c0_4 = arith.constant 0 : index
    %c0_5 = arith.constant 0 : index
    %2 = vector.load %arg3[%c0_3, %c0_4, %c0_5] : memref<3x32x32xf32, #tpu.memory_space<vmem>>, vector<1x32x32xf32>
    %3 = vector.shape_cast %2 : vector<1x32x32xf32> to vector<32x32xf32>
    %c1_i32 = arith.constant 1 : i32
    %4 = tpu.dynamic_rotate %0 by %c1_i32 dim 1 : vector<32x256xf32>, i32 -> vector<32x256xf32>
    %cst = arith.constant dense<0.000000e+00> : vector<32x256xf32>
    %5 = tpu.matmul %3, %4, %cst {dimension_numbers = #tpu.dot_dimension_numbers<[1], [0], [0], [1], [0, 0, 1, 1], [], []>} : vector<32x32xf32>, vector<32x256xf32>, vector<32x256xf32> -> vector<32x256xf32>
    %c1 = arith.constant 1 : index
    %c0_6 = arith.constant 0 : index
    %c0_7 = arith.constant 0 : index
    %6 = vector.load %arg3[%c1, %c0_6, %c0_7] : memref<3x32x32xf32, #tpu.memory_space<vmem>>, vector<1x32x32xf32>
    %7 = vector.shape_cast %6 : vector<1x32x32xf32> to vector<32x32xf32>
    %cst_8 = arith.constant dense<0.000000e+00> : vector<32x256xf32>
    %8 = tpu.matmul %7, %0, %cst_8 {dimension_numbers = #tpu.dot_dimension_numbers<[1], [0], [0], [1], [0, 0, 1, 1], [], []>} : vector<32x32xf32>, vector<32x256xf32>, vector<32x256xf32> -> vector<32x256xf32>
    %9 = arith.addf %5, %8 : vector<32x256xf32>
    %c2 = arith.constant 2 : index
    %c0_9 = arith.constant 0 : index
    %c0_10 = arith.constant 0 : index
    %10 = vector.load %arg3[%c2, %c0_9, %c0_10] : memref<3x32x32xf32, #tpu.memory_space<vmem>>, vector<1x32x32xf32>
    %11 = vector.shape_cast %10 : vector<1x32x32xf32> to vector<32x32xf32>
    %c255_i32 = arith.constant 255 : i32
    %12 = tpu.dynamic_rotate %0 by %c255_i32 dim 1 : vector<32x256xf32>, i32 -> vector<32x256xf32>
    %cst_11 = arith.constant dense<0.000000e+00> : vector<32x256xf32>
    %13 = tpu.matmul %11, %12, %cst_11 {dimension_numbers = #tpu.dot_dimension_numbers<[1], [0], [0], [1], [0, 0, 1, 1], [], []>} : vector<32x32xf32>, vector<32x256xf32>, vector<32x256xf32> -> vector<32x256xf32>
    %14 = arith.addf %9, %13 : vector<32x256xf32>
    %c0_12 = arith.constant 0 : index
    %c0_13 = arith.constant 0 : index
    %15 = vector.load %arg4[%c0_12, %c0_13] : memref<32x1xf32, #tpu.memory_space<vmem>>, vector<32x1xf32>
    %16 = vector.broadcast %15 : vector<32x1xf32> to vector<32x256xf32>
    %17 = arith.addf %14, %16 : vector<32x256xf32>
    %cst_14 = arith.constant 0.000000e+00 : f32
    %18 = vector.broadcast %cst_14 : f32 to vector<32x256xf32>
    %19 = arith.maximumf %17, %18 : vector<32x256xf32>
    %cst_15 = arith.constant dense<0.000000e+00> : vector<256xf32>
    %20 = vector.multi_reduction <add>, %19, %cst_15 [0] : vector<32x256xf32> to vector<256xf32>
    %21 = vector.shape_cast %20 : vector<256xf32> to vector<1x256xf32>
    %cst_16 = arith.constant 3.125000e-02 : f32
    %22 = vector.broadcast %cst_16 : f32 to vector<1x256xf32>
    %23 = arith.mulf %21, %22 : vector<1x256xf32>
    %24 = vector.broadcast %23 : vector<1x256xf32> to vector<32x256xf32>
    %25 = arith.subf %19, %24 : vector<32x256xf32>
    %26 = arith.mulf %25, %25 : vector<32x256xf32>
    %cst_17 = arith.constant dense<0.000000e+00> : vector<256xf32>
    %27 = vector.multi_reduction <add>, %26, %cst_17 [0] : vector<32x256xf32> to vector<256xf32>
    %28 = vector.shape_cast %27 : vector<256xf32> to vector<1x256xf32>
    %cst_18 = arith.constant 3.125000e-02 : f32
    %29 = vector.broadcast %cst_18 : f32 to vector<1x256xf32>
    %30 = arith.mulf %28, %29 : vector<1x256xf32>
    %cst_19 = arith.constant 9.99999974E-6 : f32
    %31 = vector.broadcast %cst_19 : f32 to vector<1x256xf32>
    %32 = arith.addf %30, %31 : vector<1x256xf32>
    %33 = math.rsqrt %32 : vector<1x256xf32>
    %34 = vector.broadcast %33 : vector<1x256xf32> to vector<32x256xf32>
    %35 = arith.mulf %25, %34 : vector<32x256xf32>
    %c0_20 = arith.constant 0 : index
    %c0_21 = arith.constant 0 : index
    %36 = vector.load %arg5[%c0_20, %c0_21] : memref<32x1xf32, #tpu.memory_space<vmem>>, vector<32x1xf32>
    %37 = vector.broadcast %36 : vector<32x1xf32> to vector<32x256xf32>
    %38 = arith.mulf %35, %37 : vector<32x256xf32>
    %c0_22 = arith.constant 0 : index
    %c0_23 = arith.constant 0 : index
    %39 = vector.load %arg6[%c0_22, %c0_23] : memref<32x1xf32, #tpu.memory_space<vmem>>, vector<32x1xf32>
    %40 = vector.broadcast %39 : vector<32x1xf32> to vector<32x256xf32>
    %41 = arith.addf %38, %40 : vector<32x256xf32>
    %42 = vector.broadcast %1 : vector<1x256xf32> to vector<32x256xf32>
    %43 = arith.mulf %41, %42 : vector<32x256xf32>
    %c0_24 = arith.constant 0 : index
    %c0_25 = arith.constant 0 : index
    %c0_26 = arith.constant 0 : index
    %44 = vector.load %arg7[%c0_24, %c0_25, %c0_26] : memref<3x32x32xf32, #tpu.memory_space<vmem>>, vector<1x32x32xf32>
    %45 = vector.shape_cast %44 : vector<1x32x32xf32> to vector<32x32xf32>
    %c1_i32_27 = arith.constant 1 : i32
    %46 = tpu.dynamic_rotate %43 by %c1_i32_27 dim 1 : vector<32x256xf32>, i32 -> vector<32x256xf32>
    %cst_28 = arith.constant dense<0.000000e+00> : vector<32x256xf32>
    %47 = tpu.matmul %45, %46, %cst_28 {dimension_numbers = #tpu.dot_dimension_numbers<[1], [0], [0], [1], [0, 0, 1, 1], [], []>} : vector<32x32xf32>, vector<32x256xf32>, vector<32x256xf32> -> vector<32x256xf32>
    %c1_29 = arith.constant 1 : index
    %c0_30 = arith.constant 0 : index
    %c0_31 = arith.constant 0 : index
    %48 = vector.load %arg7[%c1_29, %c0_30, %c0_31] : memref<3x32x32xf32, #tpu.memory_space<vmem>>, vector<1x32x32xf32>
    %49 = vector.shape_cast %48 : vector<1x32x32xf32> to vector<32x32xf32>
    %cst_32 = arith.constant dense<0.000000e+00> : vector<32x256xf32>
    %50 = tpu.matmul %49, %43, %cst_32 {dimension_numbers = #tpu.dot_dimension_numbers<[1], [0], [0], [1], [0, 0, 1, 1], [], []>} : vector<32x32xf32>, vector<32x256xf32>, vector<32x256xf32> -> vector<32x256xf32>
    %51 = arith.addf %47, %50 : vector<32x256xf32>
    %c2_33 = arith.constant 2 : index
    %c0_34 = arith.constant 0 : index
    %c0_35 = arith.constant 0 : index
    %52 = vector.load %arg7[%c2_33, %c0_34, %c0_35] : memref<3x32x32xf32, #tpu.memory_space<vmem>>, vector<1x32x32xf32>
    %53 = vector.shape_cast %52 : vector<1x32x32xf32> to vector<32x32xf32>
    %c255_i32_36 = arith.constant 255 : i32
    %54 = tpu.dynamic_rotate %43 by %c255_i32_36 dim 1 : vector<32x256xf32>, i32 -> vector<32x256xf32>
    %cst_37 = arith.constant dense<0.000000e+00> : vector<32x256xf32>
    %55 = tpu.matmul %53, %54, %cst_37 {dimension_numbers = #tpu.dot_dimension_numbers<[1], [0], [0], [1], [0, 0, 1, 1], [], []>} : vector<32x32xf32>, vector<32x256xf32>, vector<32x256xf32> -> vector<32x256xf32>
    %56 = arith.addf %51, %55 : vector<32x256xf32>
    %c0_38 = arith.constant 0 : index
    %c0_39 = arith.constant 0 : index
    %57 = vector.load %arg8[%c0_38, %c0_39] : memref<32x1xf32, #tpu.memory_space<vmem>>, vector<32x1xf32>
    %58 = vector.broadcast %57 : vector<32x1xf32> to vector<32x256xf32>
    %59 = arith.addf %56, %58 : vector<32x256xf32>
    %cst_40 = arith.constant 0.000000e+00 : f32
    %60 = vector.broadcast %cst_40 : f32 to vector<32x256xf32>
    %61 = arith.maximumf %59, %60 : vector<32x256xf32>
    %cst_41 = arith.constant dense<0.000000e+00> : vector<256xf32>
    %62 = vector.multi_reduction <add>, %61, %cst_41 [0] : vector<32x256xf32> to vector<256xf32>
    %63 = vector.shape_cast %62 : vector<256xf32> to vector<1x256xf32>
    %cst_42 = arith.constant 3.125000e-02 : f32
    %64 = vector.broadcast %cst_42 : f32 to vector<1x256xf32>
    %65 = arith.mulf %63, %64 : vector<1x256xf32>
    %66 = vector.broadcast %65 : vector<1x256xf32> to vector<32x256xf32>
    %67 = arith.subf %61, %66 : vector<32x256xf32>
    %68 = arith.mulf %67, %67 : vector<32x256xf32>
    %cst_43 = arith.constant dense<0.000000e+00> : vector<256xf32>
    %69 = vector.multi_reduction <add>, %68, %cst_43 [0] : vector<32x256xf32> to vector<256xf32>
    %70 = vector.shape_cast %69 : vector<256xf32> to vector<1x256xf32>
    %cst_44 = arith.constant 3.125000e-02 : f32
    %71 = vector.broadcast %cst_44 : f32 to vector<1x256xf32>
    %72 = arith.mulf %70, %71 : vector<1x256xf32>
    %cst_45 = arith.constant 9.99999974E-6 : f32
    %73 = vector.broadcast %cst_45 : f32 to vector<1x256xf32>
    %74 = arith.addf %72, %73 : vector<1x256xf32>
    %75 = math.rsqrt %74 : vector<1x256xf32>
    %76 = vector.broadcast %75 : vector<1x256xf32> to vector<32x256xf32>
    %77 = arith.mulf %67, %76 : vector<32x256xf32>
    %c0_46 = arith.constant 0 : index
    %c0_47 = arith.constant 0 : index
    %78 = vector.load %arg9[%c0_46, %c0_47] : memref<32x1xf32, #tpu.memory_space<vmem>>, vector<32x1xf32>
    %79 = vector.broadcast %78 : vector<32x1xf32> to vector<32x256xf32>
    %80 = arith.mulf %77, %79 : vector<32x256xf32>
    %cst_48 = arith.constant dense<0.000000e+00> : vector<256xf32>
    %81 = vector.multi_reduction <add>, %80, %cst_48 [0] : vector<32x256xf32> to vector<256xf32>
    %82 = vector.shape_cast %81 : vector<256xf32> to vector<1x256xf32>
    %c0_49 = arith.constant 0 : index
    %c0_50 = arith.constant 0 : index
    %83 = vector.load %arg10[%c0_49, %c0_50] : memref<1x1xf32, #tpu.memory_space<vmem>>, vector<1x1xf32>
    %84 = vector.broadcast %83 : vector<1x1xf32> to vector<1x256xf32>
    %85 = arith.addf %82, %84 : vector<1x256xf32>
    %c0_51 = arith.constant 0 : index
    %c0_52 = arith.constant 0 : index
    %86 = vector.load %arg11[%c0_51, %c0_52] : memref<1x256xf32, #tpu.memory_space<vmem>>, vector<1x256xf32>
    tpu.vector_store %arg11[%c0_51, %c0_52], %85 {strides = array<i32>} : memref<1x256xf32, #tpu.memory_space<vmem>>, vector<1x256xf32>,
    return
  }
  func.func @transform_0(%arg0: i32) -> (i32, i32) {
    %c0_i32 = arith.constant 0 : i32
    %c0_i32_0 = arith.constant 0 : i32
    return %c0_i32, %arg0 : i32, i32
  }
  func.func @transform_1(%arg0: i32) -> (i32, i32) {
    %c0_i32 = arith.constant 0 : i32
    %c0_i32_0 = arith.constant 0 : i32
    %c0_i32_1 = arith.constant 0 : i32
    return %c0_i32, %c0_i32_0 : i32, i32
  }
  func.func @transform_2(%arg0: i32) -> (i32, i32, i32) {
    %c0_i32 = arith.constant 0 : i32
    %c0_i32_0 = arith.constant 0 : i32
    %c0_i32_1 = arith.constant 0 : i32
    %c0_i32_2 = arith.constant 0 : i32
    return %c0_i32, %c0_i32_0, %c0_i32_1 : i32, i32, i32
  }
  func.func @transform_3(%arg0: i32) -> (i32, i32) {
    %c0_i32 = arith.constant 0 : i32
    %c0_i32_0 = arith.constant 0 : i32
    %c0_i32_1 = arith.constant 0 : i32
    return %c0_i32, %c0_i32_0 : i32, i32
  }
  func.func @transform_4(%arg0: i32) -> (i32, i32) {
    %c0_i32 = arith.constant 0 : i32
    %c0_i32_0 = arith.constant 0 : i32
    %c0_i32_1 = arith.constant 0 : i32
    return %c0_i32, %c0_i32_0 : i32, i32
  }
  func.func @transform_5(%arg0: i32) -> (i32, i32) {
    %c0_i32 = arith.constant 0 : i32
    %c0_i32_0 = arith.constant 0 : i32
    %c0_i32_1 = arith.constant 0 : i32
    return %c0_i32, %c0_i32_0 : i32, i32
  }
  func.func @transform_6(%arg0: i32) -> (i32, i32, i32) {
    %c0_i32 = arith.constant 0 : i32
    %c0_i32_0 = arith.constant 0 : i32
    %c0_i32_1 = arith.constant 0 : i32
    %c0_i32_2 = arith.constant 0 : i32
    return %c0_i32, %c0_i32_0, %c0_i32_1 : i32, i32, i32
  }
  func.func @transform_7(%arg0: i32) -> (i32, i32) {
    %c0_i32 = arith.constant 0 : i32
    %c0_i32_0 = arith.constant 0 : i32
    %c0_i32_1 = arith.constant 0 : i32
    return %c0_i32, %c0_i32_0 : i32, i32
  }
  func.func @transform_8(%arg0: i32) -> (i32, i32) {
    %c0_i32 = arith.constant 0 : i32
    %c0_i32_0 = arith.constant 0 : i32
    %c0_i32_1 = arith.constant 0 : i32
    return %c0_i32, %c0_i32_0 : i32, i32
  }
  func.func @transform_9(%arg0: i32) -> (i32, i32) {
    %c0_i32 = arith.constant 0 : i32
    %c0_i32_0 = arith.constant 0 : i32
    %c0_i32_1 = arith.constant 0 : i32
    return %c0_i32, %c0_i32_0 : i32, i32
  }
  func.func @transform_10(%arg0: i32) -> (i32, i32) {
    %c0_i32 = arith.constant 0 : i32
    %c0_i32_0 = arith.constant 0 : i32
    return %c0_i32, %arg0 : i32, i32
  }
}

</mosaic_0001>

<llo_original>
// kernel: tpu_custom_call.1
$region0: #{tpu_custom_call.1}
  #allocation0 [shape = 'u32[]', space=smem, size = 0x4, offset = 0x4, fixed_abs, tag = 'smem constant byte address 0x4 - core index']
  #allocation1 [shape = 'u32[144,128]{1,0:T(1,128)}', space=vmem, size = 0x12000, scoped, tag = 'internal scratch']
  #allocation2 [shape = 'f32[1,1]{1,0:T(1,128)S(1)}', space=vmem, size = 0x200, scoped, tag = 'scoped memory for tpu_custom_call.1']
  %s0 = inlined_call_operand.vmem [shape: f32[32,256], index: 0, kind: input, shape index: {}]
  %s1 = inlined_call_operand.vmem [shape: f32[1,256], index: 1, kind: input, shape index: {}]
  %s2 = inlined_call_operand.vmem [shape: f32[3,32,32], index: 2, kind: input, shape index: {}]
  %s3 = inlined_call_operand.vmem [shape: f32[32,1], index: 3, kind: input, shape index: {}]
  %s4 = inlined_call_operand.vmem [shape: f32[32,1], index: 4, kind: input, shape index: {}]
  %s5 = inlined_call_operand.vmem [shape: f32[32,1], index: 5, kind: input, shape index: {}]
  %s6 = inlined_call_operand.hbm [shape: f32[3,32,32], index: 6, kind: input, shape index: {}]
  %s7 = inlined_call_operand.vmem [shape: f32[32,1], index: 7, kind: input, shape index: {}]
  %s8 = inlined_call_operand.vmem [shape: f32[32,1], index: 8, kind: input, shape index: {}]
  %s9 = inlined_call_operand.<no memory space> [shape: f32[1,1], index: 9, kind: input, shape index: {}]
  %s10 = inlined_call_operand.hbm [shape: f32[1,256], index: 10, kind: output, shape index: {}]
  %s11 = sld [smem:[#allocation0]]
  $region54: #{tpu_custom_call.1} parent=0
    _
  %s13 = ssub.s32 1, %s11
  %s14 = scalar_select 0, %s13, %s11
  %v15 = vstv %s9
  %16 = vst [vmem:[#allocation2] sm:$0x1] %v15
  $region1: #{tpu_custom_call.1} parent=0
    #allocation3 [shape = 'u8[49152]{0}', space=vmem, size = 0xc000, scoped, tag = 'input window, operand 6, single buffered']
    #allocation4 [shape = 's32[1]{0}', space=sflag, size = 0x4, scoped, tag = 'scoped memory for tpu_custom_call.1']
    #allocation5 [shape = 's32[1]{0}', space=sflag, size = 0x4, scoped, tag = 'scoped memory for tpu_custom_call.1']
    #allocation6 [shape = 'u8[1024]{0}', space=vmem, size = 0x400, scoped, tag = 'output window, operand 0, single buffered']
    %17 = vsyncpa [#allocation4], 0
    %18 = vsyncpa [#allocation5], 0
    // Predicated region
    $region2: #{tpu_custom_call.1} parent=1 // pred_check
      _
    $region3: #{tpu_custom_call.1} parent=1 // pred_check_branch
      %20 = sbr.rel (0) target = $region5
    $region4: #{tpu_custom_call.1} parent=1 // pred_region
      _
    $region5: #{tpu_custom_call.1} parent=1 // pred_fallthru
      _
    // Predicated region
    $region6: #{tpu_custom_call.1} parent=1 // pred_check
      _
    $region7: #{tpu_custom_call.1} parent=1 // pred_check_branch
      %22 = sbr.rel (0) target = $region9
    $region8: #{tpu_custom_call.1} parent=1 // pred_region
      _
    $region9: #{tpu_custom_call.1} parent=1 // pred_fallthru
      _
    // Predicated region
    $region10: #{tpu_custom_call.1} parent=1 // pred_check
      _
    $region11: #{tpu_custom_call.1} parent=1 // pred_check_branch
      %24 = sbr.rel (0) target = $region13
    $region12: #{tpu_custom_call.1} parent=1 // pred_region
      _
    $region13: #{tpu_custom_call.1} parent=1 // pred_fallthru
      _
    // Predicated region
    $region14: #{tpu_custom_call.1} parent=1 // pred_check
      _
    $region15: #{tpu_custom_call.1} parent=1 // pred_check_branch
      %26 = sbr.rel (0) target = $region17
    $region16: #{tpu_custom_call.1} parent=1 // pred_region
      _
    $region17: #{tpu_custom_call.1} parent=1 // pred_fallthru
      _
    // Predicated region
    $region18: #{tpu_custom_call.1} parent=1 // pred_check
      _
    $region19: #{tpu_custom_call.1} parent=1 // pred_check_branch
      %28 = sbr.rel (0) target = $region21
    $region20: #{tpu_custom_call.1} parent=1 // pred_region
      _
    $region21: #{tpu_custom_call.1} parent=1 // pred_fallthru
      _
    // Predicated region
    $region22: #{tpu_custom_call.1} parent=1 // pred_check
      _
    $region23: #{tpu_custom_call.1} parent=1 // pred_check_branch
      %30 = sbr.rel (0) target = $region25
    $region24: #{tpu_custom_call.1} parent=1 // pred_region
      _
    $region25: #{tpu_custom_call.1} parent=1 // pred_fallthru
      _
    // Predicated region
    $region26: #{tpu_custom_call.1} parent=1 // pred_check
      _
    $region27: #{tpu_custom_call.1} parent=1 // pred_check_branch
      %32 = sbr.rel (0) target = $region29
    $region28: #{tpu_custom_call.1} parent=1 // pred_region
      %s34 = ssub.s32 1536, 1536
      %35 = vsyncadd [#allocation4], %s34
      %s36 = sshll.u32 [#allocation3], 4
      %s37 = int_to_ptr.vmem [resolvable:$true] %s36
      %42 = dma.hbm_to_vmem [thread:$0]  %s6, 1536, %s37, [#allocation4], 128, 128, 8
    $region29: #{tpu_custom_call.1} parent=1 // pred_fallthru
      _
    // Predicated region
    $region30: #{tpu_custom_call.1} parent=1 // pred_check
      _
    $region31: #{tpu_custom_call.1} parent=1 // pred_check_branch
      %44 = sbr.rel (0) target = $region33
    $region32: #{tpu_custom_call.1} parent=1 // pred_region
      _
    $region33: #{tpu_custom_call.1} parent=1 // pred_fallthru
      _
    // Predicated region
    $region34: #{tpu_custom_call.1} parent=1 // pred_check
      _
    $region35: #{tpu_custom_call.1} parent=1 // pred_check_branch
      %46 = sbr.rel (0) target = $region37
    $region36: #{tpu_custom_call.1} parent=1 // pred_region
      _
    $region37: #{tpu_custom_call.1} parent=1 // pred_fallthru
      _
    // Predicated region
    $region38: #{tpu_custom_call.1} parent=1 // pred_check
      _
    $region39: #{tpu_custom_call.1} parent=1 // pred_check_branch
      %48 = sbr.rel (0) target = $region41
    $region40: #{tpu_custom_call.1} parent=1 // pred_region
      _
    $region41: #{tpu_custom_call.1} parent=1 // pred_fallthru
      _
    // Predicated region
    $region42: #{tpu_custom_call.1} parent=1 // pred_check
      _
    $region43: #{tpu_custom_call.1} parent=1 // pred_check_branch
      %50 = sbr.rel (0) target = $region45
    $region44: #{tpu_custom_call.1} parent=1 // pred_region
      %51 = dma.done [#allocation4], 1536
    $region45: #{tpu_custom_call.1} parent=1 // pred_fallthru
      _
    %v52 = vld [vmem:[%s0] sm:$0xff]
    %v53 = vld [vmem:[%s0 + $0x8] sm:$0xff]
    %v54 = vld [vmem:[%s0 + $0x10] sm:$0xff]
    %v55 = vld [vmem:[%s0 + $0x18] sm:$0xff]
    %v56 = vld [vmem:[%s0 + $0x20] sm:$0xff]
    %v57 = vld [vmem:[%s0 + $0x28] sm:$0xff]
    %v58 = vld [vmem:[%s0 + $0x30] sm:$0xff]
    %v59 = vld [vmem:[%s0 + $0x38] sm:$0xff]
    %v60 = vld [vmem:[%s1] sm:$0x3]
    %v61 = vld [vmem:[%s2] sm:$0xff]
    %v62 = vld [vmem:[%s2 + $0x8] sm:$0xff]
    %v63 = vld [vmem:[%s2 + $0x10] sm:$0xff]
    %v64 = vld [vmem:[%s2 + $0x18] sm:$0xff]
    %65 = vrot.lane.b32.xlu0 %v52, 1
    %v66 = vpop.permute.xlu0 %65
    %67 = vrot.lane.b32.xlu0 %v54, 1
    %v68 = vpop.permute.xlu0 %67
    %69 = vrot.lane.b32.xlu0 %v56, 1
    %v70 = vpop.permute.xlu0 %69
    %71 = vrot.lane.b32.xlu0 %v58, 1
    %v72 = vpop.permute.xlu0 %71
    %73 = vrot.lane.b32.xlu0 %v53, 1
    %v74 = vpop.permute.xlu0 %73
    %75 = vrot.lane.b32.xlu0 %v55, 1
    %v76 = vpop.permute.xlu0 %75
    %77 = vrot.lane.b32.xlu0 %v57, 1
    %v78 = vpop.permute.xlu0 %77
    %79 = vrot.lane.b32.xlu0 %v59, 1
    %v80 = vpop.permute.xlu0 %79
    %v81 = vlaneseq
    %v82 = vand.u32 %v81, 127
    %vm83 = vcmp.lt.s32.totalorder %v82, 1
    %v84 = vsel %vm83, %v66, %v74
    %v85 = vsel %vm83, %v68, %v76
    %v86 = vsel %vm83, %v70, %v78
    %v87 = vsel %vm83, %v72, %v80
    %v88 = vsel %vm83, %v74, %v66
    %v89 = vsel %vm83, %v76, %v68
    %v90 = vsel %vm83, %v78, %v70
    %v91 = vsel %vm83, %v80, %v72
    %s92 = scalar_lea.vmem %s2, 32
    %v93 = vld [vmem:[%s92] sm:$0xff]
    %v94 = vld [vmem:[%s92 + $0x8] sm:$0xff]
    %v95 = vld [vmem:[%s92 + $0x10] sm:$0xff]
    %v96 = vld [vmem:[%s92 + $0x18] sm:$0xff]
    %vm97 = vcmask 261120
    %v99 = vsel %vm97, %v93, 0
    %v102 = vsel %vm97, %v94, 0
    %v105 = vsel %vm97, %v95, 0
    %v108 = vsel %vm97, %v96, 0
    %110 = vmatprep.subr.mxu0 %v53
    %111 = vmatpush1.msra.mxu0 %v52
    %112 = vmatprep.subr.mxu0 %v55
    %113 = vmatpush1.msra.mxu0 %v54
    %114 = vmatprep.subr.mxu0 %v57
    %115 = vmatpush1.msra.mxu0 %v56
    %116 = vmatprep.subr.mxu0 %v59
    %117 = vmatpush1.msra.mxu0 %v58
    %118 = vmatprep.subr.mxu0 0.0
    %119 = vmatpush1.msra.mxu0 0.0
    %120 = vmatprep.subr.mxu0 0.0
    %121 = vmatpush1.msra.mxu0 0.0
    %122 = vmatprep.subr.mxu0 0.0
    %123 = vmatpush1.msra.mxu0 0.0
    %124 = vmatprep.subr.mxu0 0.0
    %125 = vmatpush1.msra.mxu0 0.0
    %126 = vmatprep.subr.mxu0 0.0
    %127 = vmatpush1.msra.mxu0 0.0
    %128 = vmatprep.subr.mxu0 0.0
    %129 = vmatpush1.msra.mxu0 0.0
    %130 = vmatprep.subr.mxu0 0.0
    %131 = vmatpush1.msra.mxu0 0.0
    %132 = vmatprep.subr.mxu0 0.0
    %133 = vmatpush1.msra.mxu0 0.0
    %134 = vmatprep.subr.mxu0 0.0
    %135 = vmatpush1.msra.mxu0 0.0
    %136 = vmatprep.subr.mxu0 0.0
    %137 = vmatpush1.msra.mxu0 0.0
    %138 = vmatprep.subr.mxu0 0.0
    %139 = vmatpush1.msra.mxu0 0.0
    %140 = vmatprep.subr.mxu0 0.0
    %141 = vmatpush1.msra.mxu0 0.0
    %142 = vmatprep.subr.mxu0 0.0
    %143 = vmatpush1.msra.mxu0 0.0
    %144 = vmatprep.subr.mxu0 0.0
    %145 = vmatpush1.msra.mxu0 0.0
    %146 = vmatprep.subr.mxu0 0.0
    %147 = vmatpush1.msra.mxu0 0.0
    %148 = vmatprep.subr.mxu0 0.0
    %149 = vmatpush1.msra.mxu0 0.0
    %150 = vmatprep.subr.mxu0 0.0
    %151 = vmatpush1.msra.mxu0 0.0
    %152 = vmatprep.subr.mxu0 0.0
    %153 = vmatpush1.msra.mxu0 0.0
    %154 = vmatprep.subr.mxu0 0.0
    %155 = vmatpush1.msra.mxu0 0.0
    %156 = vmatprep.subr.mxu0 0.0
    %157 = vmatpush1.msra.mxu0 0.0
    %158 = vmatprep.subr.mxu0 0.0
    %159 = vmatpush1.msra.mxu0 0.0
    %160 = vmatprep.subr.mxu0 0.0
    %161 = vmatpush1.msra.mxu0 0.0
    %162 = vmatprep.subr.mxu0 0.0
    %163 = vmatpush1.msra.mxu0 0.0
    %164 = vmatprep.subr.mxu0 0.0
    %165 = vmatpush1.msra.mxu0 0.0
    %166 = vmatprep.subr.mxu0 0.0
    %167 = vmatpush1.msra.mxu0 0.0
    %168 = vmatprep.subr.mxu0 0.0
    %169 = vmatpush1.msra.mxu0 0.0
    %170 = vmatprep.subr.mxu0 0.0
    %171 = vmatpush1.msra.mxu0 0.0
    %172 = vmatprep.subr.mxu0 0.0
    %173 = vmatpush1.msra.mxu0 0.0
    %174 = vmatprep.mubr.f32.mxu0 0.0
    %175 = vmatmul.mubr.f32.gmra.mrb[0].mxu0 %v99
    %v176 = vpop.f32.mrb[0].mxu0
    %v177 = vadd.f32 0.0, %v176
    %v178 = vpop.f32.mrb[0].mxu0
    %v179 = vadd.f32 0.0, %v178
    %180 = vmatprep.mubr.f32.mxu0 0.0
    %181 = vmatmul.mubr.f32.gmra.mrb[0].mxu0 %v102
    %v182 = vpop.f32.mrb[0].mxu0
    %v183 = vadd.f32 0.0, %v182
    %v184 = vpop.f32.mrb[0].mxu0
    %v185 = vadd.f32 0.0, %v184
    %186 = vmatprep.mubr.f32.mxu0 0.0
    %187 = vmatmul.mubr.f32.gmra.mrb[0].mxu0 %v105
    %v188 = vpop.f32.mrb[0].mxu0
    %v189 = vadd.f32 0.0, %v188
    %v190 = vpop.f32.mrb[0].mxu0
    %v191 = vadd.f32 0.0, %v190
    %192 = vmatprep.mubr.f32.mxu0 0.0
    %193 = vmatmul.mubr.f32.gmra.mrb[0].mxu0 %v108
    %v194 = vpop.f32.mrb[0].mxu0
    %v195 = vadd.f32 0.0, %v194
    %v196 = vpop.f32.mrb[0].mxu0
    %v197 = vadd.f32 0.0, %v196
    %198 = vdwg.mxu0
    %v200 = vsel %vm97, %v61, 0
    %v203 = vsel %vm97, %v62, 0
    %v206 = vsel %vm97, %v63, 0
    %v209 = vsel %vm97, %v64, 0
    %211 = vmatprep.subr.mxu0 %v84
    %212 = vmatpush1.msra.mxu0 %v88
    %213 = vmatprep.subr.mxu0 %v85
    %214 = vmatpush1.msra.mxu0 %v89
    %215 = vmatprep.subr.mxu0 %v86
    %216 = vmatpush1.msra.mxu0 %v90
    %217 = vmatprep.subr.mxu0 %v87
    %218 = vmatpush1.msra.mxu0 %v91
    %219 = vmatprep.subr.mxu0 0.0
    %220 = vmatpush1.msra.mxu0 0.0
    %221 = vmatprep.subr.mxu0 0.0
    %222 = vmatpush1.msra.mxu0 0.0
    %223 = vmatprep.subr.mxu0 0.0
    %224 = vmatpush1.msra.mxu0 0.0
    %225 = vmatprep.subr.mxu0 0.0
    %226 = vmatpush1.msra.mxu0 0.0
    %227 = vmatprep.subr.mxu0 0.0
    %228 = vmatpush1.msra.mxu0 0.0
    %229 = vmatprep.subr.mxu0 0.0
    %230 = vmatpush1.msra.mxu0 0.0
    %231 = vmatprep.subr.mxu0 0.0
    %232 = vmatpush1.msra.mxu0 0.0
    %233 = vmatprep.subr.mxu0 0.0
    %234 = vmatpush1.msra.mxu0 0.0
    %235 = vmatprep.subr.mxu0 0.0
    %236 = vmatpush1.msra.mxu0 0.0
    %237 = vmatprep.subr.mxu0 0.0
    %238 = vmatpush1.msra.mxu0 0.0
    %239 = vmatprep.subr.mxu0 0.0
    %240 = vmatpush1.msra.mxu0 0.0
    %241 = vmatprep.subr.mxu0 0.0
    %242 = vmatpush1.msra.mxu0 0.0
    %243 = vmatprep.subr.mxu0 0.0
    %244 = vmatpush1.msra.mxu0 0.0
    %245 = vmatprep.subr.mxu0 0.0
    %246 = vmatpush1.msra.mxu0 0.0
    %247 = vmatprep.subr.mxu0 0.0
    %248 = vmatpush1.msra.mxu0 0.0
    %249 = vmatprep.subr.mxu0 0.0
    %250 = vmatpush1.msra.mxu0 0.0
    %251 = vmatprep.subr.mxu0 0.0
    %252 = vmatpush1.msra.mxu0 0.0
    %253 = vmatprep.subr.mxu0 0.0
    %254 = vmatpush1.msra.mxu0 0.0
    %255 = vmatprep.subr.mxu0 0.0
    %256 = vmatpush1.msra.mxu0 0.0
    %257 = vmatprep.subr.mxu0 0.0
    %258 = vmatpush1.msra.mxu0 0.0
    %259 = vmatprep.subr.mxu0 0.0
    %260 = vmatpush1.msra.mxu0 0.0
    %261 = vmatprep.subr.mxu0 0.0
    %262 = vmatpush1.msra.mxu0 0.0
    %263 = vmatprep.subr.mxu0 0.0
    %264 = vmatpush1.msra.mxu0 0.0
    %265 = vmatprep.subr.mxu0 0.0
    %266 = vmatpush1.msra.mxu0 0.0
    %267 = vmatprep.subr.mxu0 0.0
    %268 = vmatpush1.msra.mxu0 0.0
    %269 = vmatprep.subr.mxu0 0.0
    %270 = vmatpush1.msra.mxu0 0.0
    %271 = vmatprep.subr.mxu0 0.0
    %272 = vmatpush1.msra.mxu0 0.0
    %273 = vmatprep.subr.mxu0 0.0
    %274 = vmatpush1.msra.mxu0 0.0
    %275 = vmatprep.mubr.f32.mxu0 0.0
    %276 = vmatmul.mubr.f32.gmra.mrb[0].mxu0 %v200
    %v277 = vpop.f32.mrb[0].mxu0
    %v278 = vadd.f32 %v177, %v277
    %v279 = vpop.f32.mrb[0].mxu0
    %v280 = vadd.f32 %v179, %v279
    %281 = vmatprep.mubr.f32.mxu0 0.0
    %282 = vmatmul.mubr.f32.gmra.mrb[0].mxu0 %v203
    %v283 = vpop.f32.mrb[0].mxu0
    %v284 = vadd.f32 %v183, %v283
    %v285 = vpop.f32.mrb[0].mxu0
    %v286 = vadd.f32 %v185, %v285
    %287 = vmatprep.mubr.f32.mxu0 0.0
    %288 = vmatmul.mubr.f32.gmra.mrb[0].mxu0 %v206
    %v289 = vpop.f32.mrb[0].mxu0
    %v290 = vadd.f32 %v189, %v289
    %v291 = vpop.f32.mrb[0].mxu0
    %v292 = vadd.f32 %v191, %v291
    %293 = vmatprep.mubr.f32.mxu0 0.0
    %294 = vmatmul.mubr.f32.gmra.mrb[0].mxu0 %v209
    %v295 = vpop.f32.mrb[0].mxu0
    %v296 = vadd.f32 %v195, %v295
    %v297 = vpop.f32.mrb[0].mxu0
    %v298 = vadd.f32 %v197, %v297
    %299 = vdwg.mxu0
    %s300 = scalar_lea.vmem %s2, 64
    %v301 = vld [vmem:[%s300] sm:$0xff]
    %v302 = vld [vmem:[%s300 + $0x8] sm:$0xff]
    %v303 = vld [vmem:[%s300 + $0x10] sm:$0xff]
    %v304 = vld [vmem:[%s300 + $0x18] sm:$0xff]
    %305 = vrot.lane.b32.xlu0 %v52, 127
    %v306 = vpop.permute.xlu0 %305
    %307 = vrot.lane.b32.xlu0 %v54, 127
    %v308 = vpop.permute.xlu0 %307
    %309 = vrot.lane.b32.xlu0 %v56, 127
    %v310 = vpop.permute.xlu0 %309
    %311 = vrot.lane.b32.xlu0 %v58, 127
    %v312 = vpop.permute.xlu0 %311
    %313 = vrot.lane.b32.xlu0 %v53, 127
    %v314 = vpop.permute.xlu0 %313
    %315 = vrot.lane.b32.xlu0 %v55, 127
    %v316 = vpop.permute.xlu0 %315
    %317 = vrot.lane.b32.xlu0 %v57, 127
    %v318 = vpop.permute.xlu0 %317
    %319 = vrot.lane.b32.xlu0 %v59, 127
    %v320 = vpop.permute.xlu0 %319
    %vm321 = vcmp.lt.s32.totalorder %v82, 127
    %v322 = vsel %vm321, %v306, %v314
    %v323 = vsel %vm321, %v308, %v316
    %v324 = vsel %vm321, %v310, %v318
    %v325 = vsel %vm321, %v312, %v320
    %v326 = vsel %vm321, %v314, %v306
    %v327 = vsel %vm321, %v316, %v308
    %v328 = vsel %vm321, %v318, %v310
    %v329 = vsel %vm321, %v320, %v312
    %v331 = vsel %vm97, %v301, 0
    %v334 = vsel %vm97, %v302, 0
    %v337 = vsel %vm97, %v303, 0
    %v340 = vsel %vm97, %v304, 0
    %342 = vmatprep.subr.mxu0 %v326
    %343 = vmatpush1.msra.mxu0 %v322
    %344 = vmatprep.subr.mxu0 %v327
    %345 = vmatpush1.msra.mxu0 %v323
    %346 = vmatprep.subr.mxu0 %v328
    %347 = vmatpush1.msra.mxu0 %v324
    %348 = vmatprep.subr.mxu0 %v329
    %349 = vmatpush1.msra.mxu0 %v325
    %350 = vmatprep.subr.mxu0 0.0
    %351 = vmatpush1.msra.mxu0 0.0
    %352 = vmatprep.subr.mxu0 0.0
    %353 = vmatpush1.msra.mxu0 0.0
    %354 = vmatprep.subr.mxu0 0.0
    %355 = vmatpush1.msra.mxu0 0.0
    %356 = vmatprep.subr.mxu0 0.0
    %357 = vmatpush1.msra.mxu0 0.0
    %358 = vmatprep.subr.mxu0 0.0
    %359 = vmatpush1.msra.mxu0 0.0
    %360 = vmatprep.subr.mxu0 0.0
    %361 = vmatpush1.msra.mxu0 0.0
    %362 = vmatprep.subr.mxu0 0.0
    %363 = vmatpush1.msra.mxu0 0.0
    %364 = vmatprep.subr.mxu0 0.0
    %365 = vmatpush1.msra.mxu0 0.0
    %366 = vmatprep.subr.mxu0 0.0
    %367 = vmatpush1.msra.mxu0 0.0
    %368 = vmatprep.subr.mxu0 0.0
    %369 = vmatpush1.msra.mxu0 0.0
    %370 = vmatprep.subr.mxu0 0.0
    %371 = vmatpush1.msra.mxu0 0.0
    %372 = vmatprep.subr.mxu0 0.0
    %373 = vmatpush1.msra.mxu0 0.0
    %374 = vmatprep.subr.mxu0 0.0
    %375 = vmatpush1.msra.mxu0 0.0
    %376 = vmatprep.subr.mxu0 0.0
    %377 = vmatpush1.msra.mxu0 0.0
    %378 = vmatprep.subr.mxu0 0.0
    %379 = vmatpush1.msra.mxu0 0.0
    %380 = vmatprep.subr.mxu0 0.0
    %381 = vmatpush1.msra.mxu0 0.0
    %382 = vmatprep.subr.mxu0 0.0
    %383 = vmatpush1.msra.mxu0 0.0
    %384 = vmatprep.subr.mxu0 0.0
    %385 = vmatpush1.msra.mxu0 0.0
    %386 = vmatprep.subr.mxu0 0.0
    %387 = vmatpush1.msra.mxu0 0.0
    %388 = vmatprep.subr.mxu0 0.0
    %389 = vmatpush1.msra.mxu0 0.0
    %390 = vmatprep.subr.mxu0 0.0
    %391 = vmatpush1.msra.mxu0 0.0
    %392 = vmatprep.subr.mxu0 0.0
    %393 = vmatpush1.msra.mxu0 0.0
    %394 = vmatprep.subr.mxu0 0.0
    %395 = vmatpush1.msra.mxu0 0.0
    %396 = vmatprep.subr.mxu0 0.0
    %397 = vmatpush1.msra.mxu0 0.0
    %398 = vmatprep.subr.mxu0 0.0
    %399 = vmatpush1.msra.mxu0 0.0
    %400 = vmatprep.subr.mxu0 0.0
    %401 = vmatpush1.msra.mxu0 0.0
    %402 = vmatprep.subr.mxu0 0.0
    %403 = vmatpush1.msra.mxu0 0.0
    %404 = vmatprep.subr.mxu0 0.0
    %405 = vmatpush1.msra.mxu0 0.0
    %406 = vmatprep.mubr.f32.mxu0 0.0
    %407 = vmatmul.mubr.f32.gmra.mrb[0].mxu0 %v331
    %v408 = vpop.f32.mrb[0].mxu0
    %v409 = vadd.f32 0.0, %v408
    %v410 = vpop.f32.mrb[0].mxu0
    %v411 = vadd.f32 0.0, %v410
    %412 = vmatprep.mubr.f32.mxu0 0.0
    %413 = vmatmul.mubr.f32.gmra.mrb[0].mxu0 %v334
    %v414 = vpop.f32.mrb[0].mxu0
    %v415 = vadd.f32 0.0, %v414
    %v416 = vpop.f32.mrb[0].mxu0
    %v417 = vadd.f32 0.0, %v416
    %418 = vmatprep.mubr.f32.mxu0 0.0
    %419 = vmatmul.mubr.f32.gmra.mrb[0].mxu0 %v337
    %v420 = vpop.f32.mrb[0].mxu0
    %v421 = vadd.f32 0.0, %v420
    %v422 = vpop.f32.mrb[0].mxu0
    %v423 = vadd.f32 0.0, %v422
    %424 = vmatprep.mubr.f32.mxu0 0.0
    %425 = vmatmul.mubr.f32.gmra.mrb[0].mxu0 %v340
    %v426 = vpop.f32.mrb[0].mxu0
    %v427 = vadd.f32 0.0, %v426
    %v428 = vpop.f32.mrb[0].mxu0
    %v429 = vadd.f32 0.0, %v428
    %430 = vdwg.mxu0
    %v431 = vadd.f32 %v278, %v409
    %v432 = vadd.f32 %v280, %v411
    %v433 = vadd.f32 %v284, %v415
    %v434 = vadd.f32 %v286, %v417
    %v435 = vadd.f32 %v290, %v421
    %v436 = vadd.f32 %v292, %v423
    %v437 = vadd.f32 %v296, %v427
    %v438 = vadd.f32 %v298, %v429
    %v439 = vld [vmem:[%s3] sm:$0xff]
    %v440 = vld [vmem:[%s3 + $0x8] sm:$0xff]
    %v441 = vld [vmem:[%s3 + $0x10] sm:$0xff]
    %v442 = vld [vmem:[%s3 + $0x18] sm:$0xff]
    %444 = vset.pattern.permute.xlu0 0
    %445 = vperm.xlu0 %444, %v439
    %v446 = vpop.permute.xlu0 %445
    %449 = vset.pattern.permute.xlu0 0
    %450 = vperm.xlu0 %449, %v440
    %v451 = vpop.permute.xlu0 %450
    %454 = vset.pattern.permute.xlu0 0
    %455 = vperm.xlu0 %454, %v441
    %v456 = vpop.permute.xlu0 %455
    %459 = vset.pattern.permute.xlu0 0
    %460 = vperm.xlu0 %459, %v442
    %v461 = vpop.permute.xlu0 %460
    %v463 = vadd.f32 %v431, %v446
    %v464 = vadd.f32 %v432, %v446
    %v465 = vadd.f32 %v433, %v451
    %v466 = vadd.f32 %v434, %v451
    %v467 = vadd.f32 %v435, %v456
    %v468 = vadd.f32 %v436, %v456
    %v469 = vadd.f32 %v437, %v461
    %v470 = vadd.f32 %v438, %v461
    %v471 = vmax.f32 %v463, 0.0
    %v472 = vmax.f32 %v464, 0.0
    %v473 = vmax.f32 %v465, 0.0
    %v474 = vmax.f32 %v466, 0.0
    %v475 = vmax.f32 %v467, 0.0
    %v476 = vmax.f32 %v468, 0.0
    %v477 = vmax.f32 %v469, 0.0
    %v478 = vmax.f32 %v470, 0.0
    %v479 = vadd.f32 %v471, %v473
    %v480 = vadd.f32 %v479, %v475
    %v481 = vadd.f32 %v480, %v477
    %v482 = vrot.slane %v481, 4
    %v483 = vadd.f32 %v481, %v482
    %v484 = vrot.slane %v483, 2
    %v485 = vadd.f32 %v483, %v484
    %v486 = vrot.slane %v485, 1
    %v487 = vadd.f32 %v485, %v486
    %v488 = vadd.f32 %v472, %v474
    %v489 = vadd.f32 %v488, %v476
    %v490 = vadd.f32 %v489, %v478
    %v491 = vrot.slane %v490, 4
    %v492 = vadd.f32 %v490, %v491
    %v493 = vrot.slane %v492, 2
    %v494 = vadd.f32 %v492, %v493
    %v495 = vrot.slane %v494, 1
    %v496 = vadd.f32 %v494, %v495
    %v497 = vmul.f32 %v487, 0.03125
    %v498 = vmul.f32 %v496, 0.03125
    %v499 = vsub.f32 %v471, %v497
    %v500 = vsub.f32 %v472, %v498
    %v501 = vsub.f32 %v473, %v497
    %v502 = vsub.f32 %v474, %v498
    %v503 = vsub.f32 %v475, %v497
    %v504 = vsub.f32 %v476, %v498
    %v505 = vsub.f32 %v477, %v497
    %v506 = vsub.f32 %v478, %v498
    %v507 = vmul.f32 %v499, %v499
    %v508 = vmul.f32 %v500, %v500
    %v509 = vmul.f32 %v501, %v501
    %v510 = vmul.f32 %v502, %v502
    %v511 = vmul.f32 %v503, %v503
    %v512 = vmul.f32 %v504, %v504
    %v513 = vmul.f32 %v505, %v505
    %v514 = vmul.f32 %v506, %v506
    %v515 = vadd.f32 %v507, %v509
    %v516 = vadd.f32 %v515, %v511
    %v517 = vadd.f32 %v516, %v513
    %v518 = vrot.slane %v517, 4
    %v519 = vadd.f32 %v517, %v518
    %v520 = vrot.slane %v519, 2
    %v521 = vadd.f32 %v519, %v520
    %v522 = vrot.slane %v521, 1
    %v523 = vadd.f32 %v521, %v522
    %v524 = vadd.f32 %v508, %v510
    %v525 = vadd.f32 %v524, %v512
    %v526 = vadd.f32 %v525, %v514
    %v527 = vrot.slane %v526, 4
    %v528 = vadd.f32 %v526, %v527
    %v529 = vrot.slane %v528, 2
    %v530 = vadd.f32 %v528, %v529
    %v531 = vrot.slane %v530, 1
    %v532 = vadd.f32 %v530, %v531
    %v533 = vmul.f32 %v523, 0.03125
    %v534 = vmul.f32 %v532, 0.03125
    %v535 = vadd.f32 %v533, 1e-05
    %v536 = vadd.f32 %v534, 1e-05
    %v537 = vrsqrt.pop %v535
    %v538 = vrsqrt.pop %v536
    %v539 = vmul.f32 %v499, %v537
    %v540 = vmul.f32 %v500, %v538
    %v541 = vmul.f32 %v501, %v537
    %v542 = vmul.f32 %v502, %v538
    %v543 = vmul.f32 %v503, %v537
    %v544 = vmul.f32 %v504, %v538
    %v545 = vmul.f32 %v505, %v537
    %v546 = vmul.f32 %v506, %v538
    %v547 = vld [vmem:[%s4] sm:$0xff]
    %v548 = vld [vmem:[%s4 + $0x8] sm:$0xff]
    %v549 = vld [vmem:[%s4 + $0x10] sm:$0xff]
    %v550 = vld [vmem:[%s4 + $0x18] sm:$0xff]
    %552 = vset.pattern.permute.xlu0 0
    %553 = vperm.xlu0 %552, %v547
    %v554 = vpop.permute.xlu0 %553
    %557 = vset.pattern.permute.xlu0 0
    %558 = vperm.xlu0 %557, %v548
    %v559 = vpop.permute.xlu0 %558
    %562 = vset.pattern.permute.xlu0 0
    %563 = vperm.xlu0 %562, %v549
    %v564 = vpop.permute.xlu0 %563
    %567 = vset.pattern.permute.xlu0 0
    %568 = vperm.xlu0 %567, %v550
    %v569 = vpop.permute.xlu0 %568
    %v571 = vmul.f32 %v539, %v554
    %v572 = vmul.f32 %v540, %v554
    %v573 = vmul.f32 %v541, %v559
    %v574 = vmul.f32 %v542, %v559
    %v575 = vmul.f32 %v543, %v564
    %v576 = vmul.f32 %v544, %v564
    %v577 = vmul.f32 %v545, %v569
    %v578 = vmul.f32 %v546, %v569
    %v579 = vld [vmem:[%s5] sm:$0xff]
    %v580 = vld [vmem:[%s5 + $0x8] sm:$0xff]
    %v581 = vld [vmem:[%s5 + $0x10] sm:$0xff]
    %v582 = vld [vmem:[%s5 + $0x18] sm:$0xff]
    %584 = vset.pattern.permute.xlu0 0
    %585 = vperm.xlu0 %584, %v579
    %v586 = vpop.permute.xlu0 %585
    %589 = vset.pattern.permute.xlu0 0
    %590 = vperm.xlu0 %589, %v580
    %v591 = vpop.permute.xlu0 %590
    %594 = vset.pattern.permute.xlu0 0
    %595 = vperm.xlu0 %594, %v581
    %v596 = vpop.permute.xlu0 %595
    %599 = vset.pattern.permute.xlu0 0
    %600 = vperm.xlu0 %599, %v582
    %v601 = vpop.permute.xlu0 %600
    %v603 = vadd.f32 %v571, %v586
    %v604 = vadd.f32 %v572, %v586
    %v605 = vadd.f32 %v573, %v591
    %v606 = vadd.f32 %v574, %v591
    %v607 = vadd.f32 %v575, %v596
    %v608 = vadd.f32 %v576, %v596
    %v609 = vadd.f32 %v577, %v601
    %v610 = vadd.f32 %v578, %v601
    %v612 = vlaneseq
    %v613 = vshrl.u32 %v612, 7
    %v614 = vsub.s32 0, %v613
    %v615 = vrot.slane %v60, %v614
    %v616 = vlaneseq
    %v617 = vshrl.u32 %v616, 7
    %v618 = vsub.s32 1, %v617
    %v619 = vrot.slane %v60, %v618
    %v622 = vmul.f32 %v603, %v615
    %v623 = vmul.f32 %v604, %v619
    %v624 = vmul.f32 %v605, %v615
    %v625 = vmul.f32 %v606, %v619
    %v626 = vmul.f32 %v607, %v615
    %v627 = vmul.f32 %v608, %v619
    %v628 = vmul.f32 %v609, %v615
    %v629 = vmul.f32 %v610, %v619
    %v630 = vld [vmem:[#allocation3] sm:$0xff]
    %v631 = vld [vmem:[#allocation3 + $0x8] sm:$0xff]
    %v632 = vld [vmem:[#allocation3 + $0x10] sm:$0xff]
    %v633 = vld [vmem:[#allocation3 + $0x18] sm:$0xff]
    %634 = vrot.lane.b32.xlu0 %v622, 1
    %v635 = vpop.permute.xlu0 %634
    %636 = vrot.lane.b32.xlu0 %v624, 1
    %v637 = vpop.permute.xlu0 %636
    %638 = vrot.lane.b32.xlu0 %v626, 1
    %v639 = vpop.permute.xlu0 %638
    %640 = vrot.lane.b32.xlu0 %v628, 1
    %v641 = vpop.permute.xlu0 %640
    %642 = vrot.lane.b32.xlu0 %v623, 1
    %v643 = vpop.permute.xlu0 %642
    %644 = vrot.lane.b32.xlu0 %v625, 1
    %v645 = vpop.permute.xlu0 %644
    %646 = vrot.lane.b32.xlu0 %v627, 1
    %v647 = vpop.permute.xlu0 %646
    %648 = vrot.lane.b32.xlu0 %v629, 1
    %v649 = vpop.permute.xlu0 %648
    %v650 = vsel %vm83, %v635, %v643
    %v651 = vsel %vm83, %v637, %v645
    %v652 = vsel %vm83, %v639, %v647
    %v653 = vsel %vm83, %v641, %v649
    %v654 = vsel %vm83, %v643, %v635
    %v655 = vsel %vm83, %v645, %v637
    %v656 = vsel %vm83, %v647, %v639
    %v657 = vsel %vm83, %v649, %v641
    %s658 = scalar_lea.vmem [#allocation3], 32
    %v659 = vld [vmem:[%s658] sm:$0xff]
    %v660 = vld [vmem:[%s658 + $0x8] sm:$0xff]
    %v661 = vld [vmem:[%s658 + $0x10] sm:$0xff]
    %v662 = vld [vmem:[%s658 + $0x18] sm:$0xff]
    %v664 = vsel %vm97, %v659, 0
    %v667 = vsel %vm97, %v660, 0
    %v670 = vsel %vm97, %v661, 0
    %v673 = vsel %vm97, %v662, 0
    %675 = vmatprep.subr.mxu0 %v623
    %676 = vmatpush1.msra.mxu0 %v622
    %677 = vmatprep.subr.mxu0 %v625
    %678 = vmatpush1.msra.mxu0 %v624
    %679 = vmatprep.subr.mxu0 %v627
    %680 = vmatpush1.msra.mxu0 %v626
    %681 = vmatprep.subr.mxu0 %v629
    %682 = vmatpush1.msra.mxu0 %v628
    %683 = vmatprep.subr.mxu0 0.0
    %684 = vmatpush1.msra.mxu0 0.0
    %685 = vmatprep.subr.mxu0 0.0
    %686 = vmatpush1.msra.mxu0 0.0
    %687 = vmatprep.subr.mxu0 0.0
    %688 = vmatpush1.msra.mxu0 0.0
    %689 = vmatprep.subr.mxu0 0.0
    %690 = vmatpush1.msra.mxu0 0.0
    %691 = vmatprep.subr.mxu0 0.0
    %692 = vmatpush1.msra.mxu0 0.0
    %693 = vmatprep.subr.mxu0 0.0
    %694 = vmatpush1.msra.mxu0 0.0
    %695 = vmatprep.subr.mxu0 0.0
    %696 = vmatpush1.msra.mxu0 0.0
    %697 = vmatprep.subr.mxu0 0.0
    %698 = vmatpush1.msra.mxu0 0.0
    %699 = vmatprep.subr.mxu0 0.0
    %700 = vmatpush1.msra.mxu0 0.0
    %701 = vmatprep.subr.mxu0 0.0
    %702 = vmatpush1.msra.mxu0 0.0
    %703 = vmatprep.subr.mxu0 0.0
    %704 = vmatpush1.msra.mxu0 0.0
    %705 = vmatprep.subr.mxu0 0.0
    %706 = vmatpush1.msra.mxu0 0.0
    %707 = vmatprep.subr.mxu0 0.0
    %708 = vmatpush1.msra.mxu0 0.0
    %709 = vmatprep.subr.mxu0 0.0
    %710 = vmatpush1.msra.mxu0 0.0
    %711 = vmatprep.subr.mxu0 0.0
    %712 = vmatpush1.msra.mxu0 0.0
    %713 = vmatprep.subr.mxu0 0.0
    %714 = vmatpush1.msra.mxu0 0.0
    %715 = vmatprep.subr.mxu0 0.0
    %716 = vmatpush1.msra.mxu0 0.0
    %717 = vmatprep.subr.mxu0 0.0
    %718 = vmatpush1.msra.mxu0 0.0
    %719 = vmatprep.subr.mxu0 0.0
    %720 = vmatpush1.msra.mxu0 0.0
    %721 = vmatprep.subr.mxu0 0.0
    %722 = vmatpush1.msra.mxu0 0.0
    %723 = vmatprep.subr.mxu0 0.0
    %724 = vmatpush1.msra.mxu0 0.0
    %725 = vmatprep.subr.mxu0 0.0
    %726 = vmatpush1.msra.mxu0 0.0
    %727 = vmatprep.subr.mxu0 0.0
    %728 = vmatpush1.msra.mxu0 0.0
    %729 = vmatprep.subr.mxu0 0.0
    %730 = vmatpush1.msra.mxu0 0.0
    %731 = vmatprep.subr.mxu0 0.0
    %732 = vmatpush1.msra.mxu0 0.0
    %733 = vmatprep.subr.mxu0 0.0
    %734 = vmatpush1.msra.mxu0 0.0
    %735 = vmatprep.subr.mxu0 0.0
    %736 = vmatpush1.msra.mxu0 0.0
    %737 = vmatprep.subr.mxu0 0.0
    %738 = vmatpush1.msra.mxu0 0.0
    %739 = vmatprep.mubr.f32.mxu0 0.0
    %740 = vmatmul.mubr.f32.gmra.mrb[0].mxu0 %v664
    %v741 = vpop.f32.mrb[0].mxu0
    %v742 = vadd.f32 0.0, %v741
    %v743 = vpop.f32.mrb[0].mxu0
    %v744 = vadd.f32 0.0, %v743
    %745 = vmatprep.mubr.f32.mxu0 0.0
    %746 = vmatmul.mubr.f32.gmra.mrb[0].mxu0 %v667
    %v747 = vpop.f32.mrb[0].mxu0
    %v748 = vadd.f32 0.0, %v747
    %v749 = vpop.f32.mrb[0].mxu0
    %v750 = vadd.f32 0.0, %v749
    %751 = vmatprep.mubr.f32.mxu0 0.0
    %752 = vmatmul.mubr.f32.gmra.mrb[0].mxu0 %v670
    %v753 = vpop.f32.mrb[0].mxu0
    %v754 = vadd.f32 0.0, %v753
    %v755 = vpop.f32.mrb[0].mxu0
    %v756 = vadd.f32 0.0, %v755
    %757 = vmatprep.mubr.f32.mxu0 0.0
    %758 = vmatmul.mubr.f32.gmra.mrb[0].mxu0 %v673
    %v759 = vpop.f32.mrb[0].mxu0
    %v760 = vadd.f32 0.0, %v759
    %v761 = vpop.f32.mrb[0].mxu0
    %v762 = vadd.f32 0.0, %v761
    %763 = vdwg.mxu0
    %v765 = vsel %vm97, %v630, 0
    %v768 = vsel %vm97, %v631, 0
    %v771 = vsel %vm97, %v632, 0
    %v774 = vsel %vm97, %v633, 0
    %776 = vmatprep.subr.mxu0 %v650
    %777 = vmatpush1.msra.mxu0 %v654
    %778 = vmatprep.subr.mxu0 %v651
    %779 = vmatpush1.msra.mxu0 %v655
    %780 = vmatprep.subr.mxu0 %v652
    %781 = vmatpush1.msra.mxu0 %v656
    %782 = vmatprep.subr.mxu0 %v653
    %783 = vmatpush1.msra.mxu0 %v657
    %784 = vmatprep.subr.mxu0 0.0
    %785 = vmatpush1.msra.mxu0 0.0
    %786 = vmatprep.subr.mxu0 0.0
    %787 = vmatpush1.msra.mxu0 0.0
    %788 = vmatprep.subr.mxu0 0.0
    %789 = vmatpush1.msra.mxu0 0.0
    %790 = vmatprep.subr.mxu0 0.0
    %791 = vmatpush1.msra.mxu0 0.0
    %792 = vmatprep.subr.mxu0 0.0
    %793 = vmatpush1.msra.mxu0 0.0
    %794 = vmatprep.subr.mxu0 0.0
    %795 = vmatpush1.msra.mxu0 0.0
    %796 = vmatprep.subr.mxu0 0.0
    %797 = vmatpush1.msra.mxu0 0.0
    %798 = vmatprep.subr.mxu0 0.0
    %799 = vmatpush1.msra.mxu0 0.0
    %800 = vmatprep.subr.mxu0 0.0
    %801 = vmatpush1.msra.mxu0 0.0
    %802 = vmatprep.subr.mxu0 0.0
    %803 = vmatpush1.msra.mxu0 0.0
    %804 = vmatprep.subr.mxu0 0.0
    %805 = vmatpush1.msra.mxu0 0.0
    %806 = vmatprep.subr.mxu0 0.0
    %807 = vmatpush1.msra.mxu0 0.0
    %808 = vmatprep.subr.mxu0 0.0
    %809 = vmatpush1.msra.mxu0 0.0
    %810 = vmatprep.subr.mxu0 0.0
    %811 = vmatpush1.msra.mxu0 0.0
    %812 = vmatprep.subr.mxu0 0.0
    %813 = vmatpush1.msra.mxu0 0.0
    %814 = vmatprep.subr.mxu0 0.0
    %815 = vmatpush1.msra.mxu0 0.0
    %816 = vmatprep.subr.mxu0 0.0
    %817 = vmatpush1.msra.mxu0 0.0
    %818 = vmatprep.subr.mxu0 0.0
    %819 = vmatpush1.msra.mxu0 0.0
    %820 = vmatprep.subr.mxu0 0.0
    %821 = vmatpush1.msra.mxu0 0.0
    %822 = vmatprep.subr.mxu0 0.0
    %823 = vmatpush1.msra.mxu0 0.0
    %824 = vmatprep.subr.mxu0 0.0
    %825 = vmatpush1.msra.mxu0 0.0
    %826 = vmatprep.subr.mxu0 0.0
    %827 = vmatpush1.msra.mxu0 0.0
    %828 = vmatprep.subr.mxu0 0.0
    %829 = vmatpush1.msra.mxu0 0.0
    %830 = vmatprep.subr.mxu0 0.0
    %831 = vmatpush1.msra.mxu0 0.0
    %832 = vmatprep.subr.mxu0 0.0
    %833 = vmatpush1.msra.mxu0 0.0
    %834 = vmatprep.subr.mxu0 0.0
    %835 = vmatpush1.msra.mxu0 0.0
    %836 = vmatprep.subr.mxu0 0.0
    %837 = vmatpush1.msra.mxu0 0.0
    %838 = vmatprep.subr.mxu0 0.0
    %839 = vmatpush1.msra.mxu0 0.0
    %840 = vmatprep.mubr.f32.mxu0 0.0
    %841 = vmatmul.mubr.f32.gmra.mrb[0].mxu0 %v765
    %v842 = vpop.f32.mrb[0].mxu0
    %v843 = vadd.f32 %v742, %v842
    %v844 = vpop.f32.mrb[0].mxu0
    %v845 = vadd.f32 %v744, %v844
    %846 = vmatprep.mubr.f32.mxu0 0.0
    %847 = vmatmul.mubr.f32.gmra.mrb[0].mxu0 %v768
    %v848 = vpop.f32.mrb[0].mxu0
    %v849 = vadd.f32 %v748, %v848
    %v850 = vpop.f32.mrb[0].mxu0
    %v851 = vadd.f32 %v750, %v850
    %852 = vmatprep.mubr.f32.mxu0 0.0
    %853 = vmatmul.mubr.f32.gmra.mrb[0].mxu0 %v771
    %v854 = vpop.f32.mrb[0].mxu0
    %v855 = vadd.f32 %v754, %v854
    %v856 = vpop.f32.mrb[0].mxu0
    %v857 = vadd.f32 %v756, %v856
    %858 = vmatprep.mubr.f32.mxu0 0.0
    %859 = vmatmul.mubr.f32.gmra.mrb[0].mxu0 %v774
    %v860 = vpop.f32.mrb[0].mxu0
    %v861 = vadd.f32 %v760, %v860
    %v862 = vpop.f32.mrb[0].mxu0
    %v863 = vadd.f32 %v762, %v862
    %864 = vdwg.mxu0
    %s865 = scalar_lea.vmem [#allocation3], 64
    %v866 = vld [vmem:[%s865] sm:$0xff]
    %v867 = vld [vmem:[%s865 + $0x8] sm:$0xff]
    %v868 = vld [vmem:[%s865 + $0x10] sm:$0xff]
    %v869 = vld [vmem:[%s865 + $0x18] sm:$0xff]
    %870 = vrot.lane.b32.xlu0 %v622, 127
    %v871 = vpop.permute.xlu0 %870
    %872 = vrot.lane.b32.xlu0 %v624, 127
    %v873 = vpop.permute.xlu0 %872
    %874 = vrot.lane.b32.xlu0 %v626, 127
    %v875 = vpop.permute.xlu0 %874
    %876 = vrot.lane.b32.xlu0 %v628, 127
    %v877 = vpop.permute.xlu0 %876
    %878 = vrot.lane.b32.xlu0 %v623, 127
    %v879 = vpop.permute.xlu0 %878
    %880 = vrot.lane.b32.xlu0 %v625, 127
    %v881 = vpop.permute.xlu0 %880
    %882 = vrot.lane.b32.xlu0 %v627, 127
    %v883 = vpop.permute.xlu0 %882
    %884 = vrot.lane.b32.xlu0 %v629, 127
    %v885 = vpop.permute.xlu0 %884
    %v886 = vsel %vm321, %v871, %v879
    %v887 = vsel %vm321, %v873, %v881
    %v888 = vsel %vm321, %v875, %v883
    %v889 = vsel %vm321, %v877, %v885
    %v890 = vsel %vm321, %v879, %v871
    %v891 = vsel %vm321, %v881, %v873
    %v892 = vsel %vm321, %v883, %v875
    %v893 = vsel %vm321, %v885, %v877
    %v895 = vsel %vm97, %v866, 0
    %v898 = vsel %vm97, %v867, 0
    %v901 = vsel %vm97, %v868, 0
    %v904 = vsel %vm97, %v869, 0
    %906 = vmatprep.subr.mxu0 %v890
    %907 = vmatpush1.msra.mxu0 %v886
    %908 = vmatprep.subr.mxu0 %v891
    %909 = vmatpush1.msra.mxu0 %v887
    %910 = vmatprep.subr.mxu0 %v892
    %911 = vmatpush1.msra.mxu0 %v888
    %912 = vmatprep.subr.mxu0 %v893
    %913 = vmatpush1.msra.mxu0 %v889
    %914 = vmatprep.subr.mxu0 0.0
    %915 = vmatpush1.msra.mxu0 0.0
    %916 = vmatprep.subr.mxu0 0.0
    %917 = vmatpush1.msra.mxu0 0.0
    %918 = vmatprep.subr.mxu0 0.0
    %919 = vmatpush1.msra.mxu0 0.0
    %920 = vmatprep.subr.mxu0 0.0
    %921 = vmatpush1.msra.mxu0 0.0
    %922 = vmatprep.subr.mxu0 0.0
    %923 = vmatpush1.msra.mxu0 0.0
    %924 = vmatprep.subr.mxu0 0.0
    %925 = vmatpush1.msra.mxu0 0.0
    %926 = vmatprep.subr.mxu0 0.0
    %927 = vmatpush1.msra.mxu0 0.0
    %928 = vmatprep.subr.mxu0 0.0
    %929 = vmatpush1.msra.mxu0 0.0
    %930 = vmatprep.subr.mxu0 0.0
    %931 = vmatpush1.msra.mxu0 0.0
    %932 = vmatprep.subr.mxu0 0.0
    %933 = vmatpush1.msra.mxu0 0.0
    %934 = vmatprep.subr.mxu0 0.0
    %935 = vmatpush1.msra.mxu0 0.0
    %936 = vmatprep.subr.mxu0 0.0
    %937 = vmatpush1.msra.mxu0 0.0
    %938 = vmatprep.subr.mxu0 0.0
    %939 = vmatpush1.msra.mxu0 0.0
    %940 = vmatprep.subr.mxu0 0.0
    %941 = vmatpush1.msra.mxu0 0.0
    %942 = vmatprep.subr.mxu0 0.0
    %943 = vmatpush1.msra.mxu0 0.0
    %944 = vmatprep.subr.mxu0 0.0
    %945 = vmatpush1.msra.mxu0 0.0
    %946 = vmatprep.subr.mxu0 0.0
    %947 = vmatpush1.msra.mxu0 0.0
    %948 = vmatprep.subr.mxu0 0.0
    %949 = vmatpush1.msra.mxu0 0.0
    %950 = vmatprep.subr.mxu0 0.0
    %951 = vmatpush1.msra.mxu0 0.0
    %952 = vmatprep.subr.mxu0 0.0
    %953 = vmatpush1.msra.mxu0 0.0
    %954 = vmatprep.subr.mxu0 0.0
    %955 = vmatpush1.msra.mxu0 0.0
    %956 = vmatprep.subr.mxu0 0.0
    %957 = vmatpush1.msra.mxu0 0.0
    %958 = vmatprep.subr.mxu0 0.0
    %959 = vmatpush1.msra.mxu0 0.0
    %960 = vmatprep.subr.mxu0 0.0
    %961 = vmatpush1.msra.mxu0 0.0
    %962 = vmatprep.subr.mxu0 0.0
    %963 = vmatpush1.msra.mxu0 0.0
    %964 = vmatprep.subr.mxu0 0.0
    %965 = vmatpush1.msra.mxu0 0.0
    %966 = vmatprep.subr.mxu0 0.0
    %967 = vmatpush1.msra.mxu0 0.0
    %968 = vmatprep.subr.mxu0 0.0
    %969 = vmatpush1.msra.mxu0 0.0
    %970 = vmatprep.mubr.f32.mxu0 0.0
    %971 = vmatmul.mubr.f32.gmra.mrb[0].mxu0 %v895
    %v972 = vpop.f32.mrb[0].mxu0
    %v973 = vadd.f32 0.0, %v972
    %v974 = vpop.f32.mrb[0].mxu0
    %v975 = vadd.f32 0.0, %v974
    %976 = vmatprep.mubr.f32.mxu0 0.0
    %977 = vmatmul.mubr.f32.gmra.mrb[0].mxu0 %v898
    %v978 = vpop.f32.mrb[0].mxu0
    %v979 = vadd.f32 0.0, %v978
    %v980 = vpop.f32.mrb[0].mxu0
    %v981 = vadd.f32 0.0, %v980
    %982 = vmatprep.mubr.f32.mxu0 0.0
    %983 = vmatmul.mubr.f32.gmra.mrb[0].mxu0 %v901
    %v984 = vpop.f32.mrb[0].mxu0
    %v985 = vadd.f32 0.0, %v984
    %v986 = vpop.f32.mrb[0].mxu0
    %v987 = vadd.f32 0.0, %v986
    %988 = vmatprep.mubr.f32.mxu0 0.0
    %989 = vmatmul.mubr.f32.gmra.mrb[0].mxu0 %v904
    %v990 = vpop.f32.mrb[0].mxu0
    %v991 = vadd.f32 0.0, %v990
    %v992 = vpop.f32.mrb[0].mxu0
    %v993 = vadd.f32 0.0, %v992
    %994 = vdwg.mxu0
    %v995 = vadd.f32 %v843, %v973
    %v996 = vadd.f32 %v845, %v975
    %v997 = vadd.f32 %v849, %v979
    %v998 = vadd.f32 %v851, %v981
    %v999 = vadd.f32 %v855, %v985
    %v1000 = vadd.f32 %v857, %v987
    %v1001 = vadd.f32 %v861, %v991
    %v1002 = vadd.f32 %v863, %v993
    %v1003 = vld [vmem:[%s7] sm:$0xff]
    %v1004 = vld [vmem:[%s7 + $0x8] sm:$0xff]
    %v1005 = vld [vmem:[%s7 + $0x10] sm:$0xff]
    %v1006 = vld [vmem:[%s7 + $0x18] sm:$0xff]
    %1008 = vset.pattern.permute.xlu0 0
    %1009 = vperm.xlu0 %1008, %v1003
    %v1010 = vpop.permute.xlu0 %1009
    %1013 = vset.pattern.permute.xlu0 0
    %1014 = vperm.xlu0 %1013, %v1004
    %v1015 = vpop.permute.xlu0 %1014
    %1018 = vset.pattern.permute.xlu0 0
    %1019 = vperm.xlu0 %1018, %v1005
    %v1020 = vpop.permute.xlu0 %1019
    %1023 = vset.pattern.permute.xlu0 0
    %1024 = vperm.xlu0 %1023, %v1006
    %v1025 = vpop.permute.xlu0 %1024
    %v1027 = vadd.f32 %v995, %v1010
    %v1028 = vadd.f32 %v996, %v1010
    %v1029 = vadd.f32 %v997, %v1015
    %v1030 = vadd.f32 %v998, %v1015
    %v1031 = vadd.f32 %v999, %v1020
    %v1032 = vadd.f32 %v1000, %v1020
    %v1033 = vadd.f32 %v1001, %v1025
    %v1034 = vadd.f32 %v1002, %v1025
    %v1035 = vmax.f32 %v1027, 0.0
    %v1036 = vmax.f32 %v1028, 0.0
    %v1037 = vmax.f32 %v1029, 0.0
    %v1038 = vmax.f32 %v1030, 0.0
    %v1039 = vmax.f32 %v1031, 0.0
    %v1040 = vmax.f32 %v1032, 0.0
    %v1041 = vmax.f32 %v1033, 0.0
    %v1042 = vmax.f32 %v1034, 0.0
    %v1043 = vadd.f32 %v1035, %v1037
    %v1044 = vadd.f32 %v1043, %v1039
    %v1045 = vadd.f32 %v1044, %v1041
    %v1046 = vrot.slane %v1045, 4
    %v1047 = vadd.f32 %v1045, %v1046
    %v1048 = vrot.slane %v1047, 2
    %v1049 = vadd.f32 %v1047, %v1048
    %v1050 = vrot.slane %v1049, 1
    %v1051 = vadd.f32 %v1049, %v1050
    %v1052 = vadd.f32 %v1036, %v1038
    %v1053 = vadd.f32 %v1052, %v1040
    %v1054 = vadd.f32 %v1053, %v1042
    %v1055 = vrot.slane %v1054, 4
    %v1056 = vadd.f32 %v1054, %v1055
    %v1057 = vrot.slane %v1056, 2
    %v1058 = vadd.f32 %v1056, %v1057
    %v1059 = vrot.slane %v1058, 1
    %v1060 = vadd.f32 %v1058, %v1059
    %v1061 = vmul.f32 %v1051, 0.03125
    %v1062 = vmul.f32 %v1060, 0.03125
    %v1063 = vsub.f32 %v1035, %v1061
    %v1064 = vsub.f32 %v1036, %v1062
    %v1065 = vsub.f32 %v1037, %v1061
    %v1066 = vsub.f32 %v1038, %v1062
    %v1067 = vsub.f32 %v1039, %v1061
    %v1068 = vsub.f32 %v1040, %v1062
    %v1069 = vsub.f32 %v1041, %v1061
    %v1070 = vsub.f32 %v1042, %v1062
    %v1071 = vmul.f32 %v1063, %v1063
    %v1072 = vmul.f32 %v1064, %v1064
    %v1073 = vmul.f32 %v1065, %v1065
    %v1074 = vmul.f32 %v1066, %v1066
    %v1075 = vmul.f32 %v1067, %v1067
    %v1076 = vmul.f32 %v1068, %v1068
    %v1077 = vmul.f32 %v1069, %v1069
    %v1078 = vmul.f32 %v1070, %v1070
    %v1079 = vadd.f32 %v1071, %v1073
    %v1080 = vadd.f32 %v1079, %v1075
    %v1081 = vadd.f32 %v1080, %v1077
    %v1082 = vrot.slane %v1081, 4
    %v1083 = vadd.f32 %v1081, %v1082
    %v1084 = vrot.slane %v1083, 2
    %v1085 = vadd.f32 %v1083, %v1084
    %v1086 = vrot.slane %v1085, 1
    %v1087 = vadd.f32 %v1085, %v1086
    %v1088 = vadd.f32 %v1072, %v1074
    %v1089 = vadd.f32 %v1088, %v1076
    %v1090 = vadd.f32 %v1089, %v1078
    %v1091 = vrot.slane %v1090, 4
    %v1092 = vadd.f32 %v1090, %v1091
    %v1093 = vrot.slane %v1092, 2
    %v1094 = vadd.f32 %v1092, %v1093
    %v1095 = vrot.slane %v1094, 1
    %v1096 = vadd.f32 %v1094, %v1095
    %v1097 = vmul.f32 %v1087, 0.03125
    %v1098 = vmul.f32 %v1096, 0.03125
    %v1099 = vadd.f32 %v1097, 1e-05
    %v1100 = vadd.f32 %v1098, 1e-05
    %v1101 = vrsqrt.pop %v1099
    %v1102 = vrsqrt.pop %v1100
    %v1103 = vmul.f32 %v1063, %v1101
    %v1104 = vmul.f32 %v1064, %v1102
    %v1105 = vmul.f32 %v1065, %v1101
    %v1106 = vmul.f32 %v1066, %v1102
    %v1107 = vmul.f32 %v1067, %v1101
    %v1108 = vmul.f32 %v1068, %v1102
    %v1109 = vmul.f32 %v1069, %v1101
    %v1110 = vmul.f32 %v1070, %v1102
    %v1111 = vld [vmem:[%s8] sm:$0xff]
    %v1112 = vld [vmem:[%s8 + $0x8] sm:$0xff]
    %v1113 = vld [vmem:[%s8 + $0x10] sm:$0xff]
    %v1114 = vld [vmem:[%s8 + $0x18] sm:$0xff]
    %1116 = vset.pattern.permute.xlu0 0
    %1117 = vperm.xlu0 %1116, %v1111
    %v1118 = vpop.permute.xlu0 %1117
    %1121 = vset.pattern.permute.xlu0 0
    %1122 = vperm.xlu0 %1121, %v1112
    %v1123 = vpop.permute.xlu0 %1122
    %1126 = vset.pattern.permute.xlu0 0
    %1127 = vperm.xlu0 %1126, %v1113
    %v1128 = vpop.permute.xlu0 %1127
    %1131 = vset.pattern.permute.xlu0 0
    %1132 = vperm.xlu0 %1131, %v1114
    %v1133 = vpop.permute.xlu0 %1132
    %v1135 = vmul.f32 %v1103, %v1118
    %v1136 = vmul.f32 %v1104, %v1118
    %v1137 = vmul.f32 %v1105, %v1123
    %v1138 = vmul.f32 %v1106, %v1123
    %v1139 = vmul.f32 %v1107, %v1128
    %v1140 = vmul.f32 %v1108, %v1128
    %v1141 = vmul.f32 %v1109, %v1133
    %v1142 = vmul.f32 %v1110, %v1133
    %v1143 = vadd.f32 %v1135, %v1137
    %v1144 = vadd.f32 %v1143, %v1139
    %v1145 = vadd.f32 %v1144, %v1141
    %v1146 = vrot.slane %v1145, 4
    %v1147 = vadd.f32 %v1145, %v1146
    %v1148 = vrot.slane %v1147, 2
    %v1149 = vadd.f32 %v1147, %v1148
    %v1150 = vrot.slane %v1149, 1
    %v1151 = vadd.f32 %v1149, %v1150
    %v1152 = vadd.f32 %v1136, %v1138
    %v1153 = vadd.f32 %v1152, %v1140
    %v1154 = vadd.f32 %v1153, %v1142
    %v1155 = vrot.slane %v1154, 4
    %v1156 = vadd.f32 %v1154, %v1155
    %v1157 = vrot.slane %v1156, 2
    %v1158 = vadd.f32 %v1156, %v1157
    %v1159 = vrot.slane %v1158, 1
    %v1160 = vadd.f32 %v1158, %v1159
    %v1161 = vld [vmem:[#allocation2] sm:$0x1]
    %1163 = vset.pattern.permute.xlu0 0
    %1164 = vperm.xlu0 %1163, %v1161
    %v1165 = vpop.permute.xlu0 %1164
    %v1167 = vlaneseq
    %v1168 = vshrl.u32 %v1167, 7
    %v1169 = vsub.s32 0, %v1168
    %v1170 = vrot.slane %v1165, %v1169
    %v1171 = vadd.f32 %v1151, %v1170
    %v1172 = vadd.f32 %v1160, %v1170
    %v1175 = vcombine.low %v1171, %v1172
    %v1177 = vunpack.c.l.s4 1966171168
    %v1178 = vunpack.c.0.s8 %v1177
    %v1179 = vlaneseq
    %v1180 = vshrl.u32 %v1179, 7
    %v1181 = vsub.s32 %v1178, %v1180
    %v1182 = vrot.slane %v1175, %v1181
    %v1184 = vunpack.c.l.s4 1966171168
    %v1185 = vunpack.c.0.s8 %v1184
    %v1186 = vlaneseq
    %v1187 = vshrl.u32 %v1186, 7
    %v1188 = vsub.s32 %v1185, %v1187
    %v1189 = vrot.slane %v1182, %v1188
    %v1191 = vlaneseq
    %vm1192 = vcmp.ge.s32.totalorder %v1191, 0
    %vm1193 = vcmp.lt.s32.totalorder %v1191, 256
    %vm1194 = vmand %vm1192, %vm1193
    %1195 = vst.msk [vmem:[#allocation6] sm:$0x3] %vm1194, %v1189
    // Predicated region
    $region46: #{tpu_custom_call.1} parent=1 // pred_check
      _
    $region47: #{tpu_custom_call.1} parent=1 // pred_check_branch
      %1197 = sbr.rel (0) target = $region49
    $region48: #{tpu_custom_call.1} parent=1 // pred_region
      %s1199 = ssub.s32 32, 32
      %1200 = vsyncadd [#allocation5], %s1199
      %s1202 = sshll.u32 [#allocation6], 4
      %s1203 = int_to_ptr.vmem [resolvable:$true] %s1202
      %1205 = dma.vmem_to_hbm [thread:$0]  %s1203, 32, %s10, [#allocation5]
    $region49: #{tpu_custom_call.1} parent=1 // pred_fallthru
      _
    // Predicated region
    $region50: #{tpu_custom_call.1} parent=1 // pred_check
      _
    $region51: #{tpu_custom_call.1} parent=1 // pred_check_branch
      %1207 = sbr.rel (0) target = $region53
    $region52: #{tpu_custom_call.1} parent=1 // pred_region
      %1208 = dma.done [#allocation5], 32
    $region53: #{tpu_custom_call.1} parent=1 // pred_fallthru
      _
    %1209 = vsyncpa [#allocation4], 1
    %1210 = vsyncpa [#allocation5], 1

</llo_original>
